<compile_context>
chip_gen: v6e
topology: v6e:2x2x1
jax: 0.10.0
libtpu: 0.0.40
codegen_flags: <defaults>
</compile_context>

<pallas_src>
import functools

import jax
import jax.numpy as jnp
from jax.experimental import pallas as pl
from jax.experimental.pallas import tpu as pltpu

# ----------------------------- config (tiny BERT-like) -----------------------
B = 2        # batch
S = 8        # sequence length
H = 32       # hidden size
FF = 4 * H   # FFN intermediate size (=128, lane-dense)
M = B * S    # flattened token count
VOCAB = 64
LN_EPS = 1e-12
Q_SCALE = 1.0 / float(H) ** 0.5

# packed (1, H) vectors, concatenated in this order -> one (NVEC, H) array
_VEC_NAMES = ("bq", "bk", "bv", "bo", "g1", "b1", "bf2", "g2", "b2", "bp")
(I_BQ, I_BK, I_BV, I_BO, I_G1, I_B1, I_BF2, I_G2, I_B2, I_BP) = range(len(_VEC_NAMES))
NVEC = len(_VEC_NAMES)


def _layernorm(x, gamma, beta):
    mu = jnp.mean(x, axis=-1, keepdims=True)
    var = jnp.mean((x - mu) ** 2, axis=-1, keepdims=True)
    return (x - mu) * jax.lax.rsqrt(var + LN_EPS) * gamma + beta


def _gelu(x):
    # TODO(synk): HF BERT default is exact erf-GELU; tanh approximation (EUP
    # friendly) gives only tiny numeric drift vs. the reference module.
    return 0.5 * x * (1.0 + jnp.tanh(0.7978845608028654 * (x + 0.044715 * x * x * x)))


def encoder_kernel(x_ref, bias_ref, wqkv_ref, w1_ref, wstk_ref, vec_ref, bf1_ref,
                   *out_refs, mode):
    x2 = x_ref[...]                                   # (M, H) f32
    x2b = x2.astype(jnp.bfloat16)                     # hoisted bf16 cast (reused)

    vecs = vec_ref[...]                               # (NVEC, H) f32
    wstk = wstk_ref[...]                              # (2H+FF, H) bf16, sublane-stacked
    wo = wstk[0:H, :]                                 # static, 16-row-aligned slices
    wp = wstk[H:2 * H, :]
    w2 = wstk[2 * H:2 * H + FF, :]

    def vrow(i):                                      # static slice -> (1, H), zero cost
        return vecs[i:i + 1, :]

    # ---- fused single-head self-attention (all B*S tokens at once) -----------
    qkv = jnp.dot(x2b, wqkv_ref[...],
                  preferred_element_type=jnp.float32)           # (M, 3H) f32
    q = (qkv[:, 0:H] + vrow(I_BQ)) * Q_SCALE                    # pre-scale q, not scores
    k = qkv[:, H:2 * H] + vrow(I_BK)
    v = qkv[:, 2 * H:3 * H] + vrow(I_BV)

    qb = q.astype(jnp.bfloat16)
    kb = k.astype(jnp.bfloat16)
    vb = v.astype(jnp.bfloat16)

    # one (M, M) score matrix; bias_ref already encodes block-diagonal batch
    # isolation + key-padding mask (additive, 0 / -1e9), built in the wrapper.
    scores = jnp.einsum("md,nd->mn", qb, kb,
                        preferred_element_type=jnp.float32)     # (M, M) f32
    scores = scores + bias_ref[...]
    scores = scores - jnp.max(scores, axis=-1, keepdims=True)
    p = jnp.exp(scores)
    p = p * pl.reciprocal(jnp.sum(p, axis=-1, keepdims=True), approx=True)

    ctx = jnp.dot(p.astype(jnp.bfloat16), vb,
                  preferred_element_type=jnp.float32)           # (M, H) f32
    attn_out = jnp.dot(ctx.astype(jnp.bfloat16), wo,
                       preferred_element_type=jnp.float32) + vrow(I_BO)
    h1 = _layernorm(x2 + attn_out, vrow(I_G1), vrow(I_B1))      # (M, H)

    # ---- feed-forward ---------------------------------------------------------
    h1b = h1.astype(jnp.bfloat16)                               # hoisted cast
    ff = _gelu(jnp.dot(h1b, w1_ref[...],
                       preferred_element_type=jnp.float32) + bf1_ref[...])   # (M, FF)
    ff = jnp.dot(ff.astype(jnp.bfloat16), w2,
                 preferred_element_type=jnp.float32) + vrow(I_BF2)
    h2 = _layernorm(h1 + ff, vrow(I_G2), vrow(I_B2))            # (M, H) last_hidden

    # ---- outputs (gated per representation) -----------------------------------
    if mode == "BASE":
        last_ref, small_ref = out_refs
        last_ref[...] = h2                                      # ONE unmasked store
    else:
        (small_ref,) = out_refs

    if mode in ("CLS", "BASE"):
        cls = h2.reshape(B, S, H)[:, 0, :]                      # (B, H), token 0 per seq
        rep = jnp.tanh(jnp.dot(cls.astype(jnp.bfloat16), wp,
                               preferred_element_type=jnp.float32) + vrow(I_BP))
    else:  # MEAN: plain (unmasked) mean over seq, exactly torch.mean(dim=1)
        rep = jnp.mean(h2.reshape(B, S, H), axis=1)             # (B, H)

    # build the padded (B, 4H)=(B,128) row in-register -> one full-width store
    small_ref[...] = jnp.concatenate(
        [rep, jnp.zeros((B, 3 * H), jnp.float32)], axis=-1)


def _full_spec(shape):
    zeros = (0,) * len(shape)
    return pl.BlockSpec(shape, lambda *_, _z=zeros: _z)


@functools.partial(jax.jit, static_argnames=("representation_type",))
def encoder_forward(hidden_in, attention_mask, params, representation_type="MEAN"):
    """hidden_in: [B, S, H] f32 embedded tokens; attention_mask: [B, S] in {0,1}."""
    assert representation_type in ("CLS", "MEAN", "BASE")

    x2 = hidden_in.reshape(M, H)                                 # flatten once (free)

    # combined additive attention bias over all B*S tokens:
    #   0  if query & key in the same sequence AND key is a real token
    # -1e9 otherwise (cross-batch or padding key)
    key_bias = (attention_mask.astype(jnp.float32).reshape(M) - 1.0) * 1e9   # (M,)
    batch_idx = jnp.repeat(jnp.arange(B), S)                                 # (M,)
    same_batch = batch_idx[:, None] == batch_idx[None, :]
    attn_bias = jnp.where(same_batch, key_bias[None, :], -1e9).astype(jnp.float32)  # (M, M)

    # pack weights: fused QKV, w1, and a sublane-stacked (wo|wp|w2) bf16 slab
    w_qkv = jnp.concatenate([params["wq"], params["wk"], params["wv"]],
                            axis=1).astype(jnp.bfloat16)                      # (H, 3H)
    w1 = params["w1"].astype(jnp.bfloat16)                                    # (H, FF)
    w_stk = jnp.concatenate([params["wo"], params["wp"], params["w2"]],
                            axis=0).astype(jnp.bfloat16)                      # (2H+FF, H)
    # pack all tiny (1, H) bias / LayerNorm vectors into one array -> 1 DMA
    vecs = jnp.concatenate([params[k] for k in _VEC_NAMES], axis=0)           # (NVEC, H)
    bf1 = params["bf1"]                                                       # (1, FF)

    inputs = (x2, attn_bias, w_qkv, w1, w_stk, vecs, bf1)
    in_specs = [_full_spec(a.shape) for a in inputs]

    if representation_type == "BASE":
        out_shape = (jax.ShapeDtypeStruct((M, H), jnp.float32),     # last_hidden (flat)
                     jax.ShapeDtypeStruct((B, 4 * H), jnp.float32))  # pooler (padded row)
        out_specs = (_full_spec((M, H)), _full_spec((B, 4 * H)))
    else:
        out_shape = (jax.ShapeDtypeStruct((B, 4 * H), jnp.float32),)  # pooled / mean
        out_specs = (_full_spec((B, 4 * H)),)

    outs = pl.pallas_call(
        functools.partial(encoder_kernel, mode=representation_type),
        out_shape=out_shape,
        grid_spec=pltpu.PrefetchScalarGridSpec(
            num_scalar_prefetch=0,
            grid=(1,),               # single invocation: whole problem fits in VMEM
            in_specs=in_specs,
            out_specs=out_specs,
        ),
        compiler_params=pltpu.CompilerParams(
            dimension_semantics=("arbitrary",)),
    )(*inputs)

    if representation_type == "CLS":
        return outs[0][:, :H]                     # pooler_output            [B, H]
    if representation_type == "MEAN":
        return outs[0][:, :H]                     # mean(last_hidden, dim=1) [B, H]
    last_flat, small = outs                       # BASE: full encoder output
    return last_flat.reshape(B, S, H), small[:, :H]


def init_params(key):
    ks = jax.random.split(key, 12)
    std = 0.02
    p = {
        "wq": jax.random.normal(ks[0], (H, H), jnp.float32) * std,
        "bq": jnp.zeros((1, H), jnp.float32),
        "wk": jax.random.normal(ks[1], (H, H), jnp.float32) * std,
        "bk": jnp.zeros((1, H), jnp.float32),
        "wv": jax.random.normal(ks[2], (H, H), jnp.float32) * std,
        "bv": jnp.zeros((1, H), jnp.float32),
        "wo": jax.random.normal(ks[3], (H, H), jnp.float32) * std,
        "bo": jnp.zeros((1, H), jnp.float32),
        "g1": jnp.ones((1, H), jnp.float32),
        "b1": jnp.zeros((1, H), jnp.float32),
        "w1": jax.random.normal(ks[4], (H, FF), jnp.float32) * std,
        "bf1": jnp.zeros((1, FF), jnp.float32),
        "w2": jax.random.normal(ks[5], (FF, H), jnp.float32) * std,
        "bf2": jnp.zeros((1, H), jnp.float32),
        "g2": jnp.ones((1, H), jnp.float32),
        "b2": jnp.zeros((1, H), jnp.float32),
        "wp": jax.random.normal(ks[6], (H, H), jnp.float32) * std,
        "bp": jnp.zeros((1, H), jnp.float32),
    }
    emb = jax.random.normal(ks[7], (VOCAB, H), jnp.float32) * std
    pos = jax.random.normal(ks[8], (S, H), jnp.float32) * std
    return p, emb, pos


if __name__ == "__main__":
    key = jax.random.PRNGKey(0)
    params, emb_table, pos_table = init_params(key)

    # TODO(synk): string tokenization (HF tokenizer) has no Pallas equivalent;
    # deterministic token ids + a padding mask stand in for tokenizer output.
    ids_key = jax.random.fold_in(key, 1)
    input_ids = jax.random.randint(ids_key, (B, S), 0, VOCAB)
    attention_mask = jnp.ones((B, S), jnp.float32).at[1, S - 2:].set(0.0)  # row 1 padded

    # embedding lookup + position embeddings = plain-JAX glue
    hidden_in = emb_table[input_ids] + pos_table[None, :, :]   # [B, S, H]

    cls_repr = encoder_forward(hidden_in, attention_mask, params,
                               representation_type="CLS")      # [B, H]
    mean_repr = encoder_forward(hidden_in, attention_mask, params,
                                representation_type="MEAN")    # [B, H]
    last_hidden, pooler = encoder_forward(hidden_in, attention_mask, params,
                                          representation_type="BASE")

    jax.block_until_ready((cls_repr, mean_repr, last_hidden, pooler))

    assert cls_repr.shape == (B, H)
    assert mean_repr.shape == (B, H)
    assert last_hidden.shape == (B, S, H)
    assert pooler.shape == (B, H)
    print("KERNEL_OK")
</pallas_src>

<mosaic_0001>
module attributes {stable_mosaic.version = 11 : i64} {
  func.func @encoder_kernel(%arg0: i32, %arg1: memref<16x32xf32, #tpu.memory_space<vmem>>, %arg2: memref<16x16xf32, #tpu.memory_space<vmem>>, %arg3: memref<32x96xbf16, #tpu.memory_space<vmem>>, %arg4: memref<32x128xbf16, #tpu.memory_space<vmem>>, %arg5: memref<192x32xbf16, #tpu.memory_space<vmem>>, %arg6: memref<10x32xf32, #tpu.memory_space<vmem>>, %arg7: memref<1x128xf32, #tpu.memory_space<vmem>>, %arg8: memref<2x128xf32, #tpu.memory_space<vmem>>) attributes {dimension_semantics = [#tpu.dimension_semantics<arbitrary>], iteration_bounds = array<i64: 1>, scalar_prefetch = 0 : i64, scratch_operands = 0 : i64, tpu.core_type = #tpu.core_type<tc>, window_params = [{pipeline_mode = #tpu.pipeline_mode<synchronous>, transform_indices = @transform_0, window_bounds = array<i64: 16, 32>}, {pipeline_mode = #tpu.pipeline_mode<synchronous>, transform_indices = @transform_1, window_bounds = array<i64: 16, 16>}, {pipeline_mode = #tpu.pipeline_mode<synchronous>, transform_indices = @transform_2, window_bounds = array<i64: 32, 96>}, {pipeline_mode = #tpu.pipeline_mode<synchronous>, transform_indices = @transform_3, window_bounds = array<i64: 32, 128>}, {pipeline_mode = #tpu.pipeline_mode<synchronous>, transform_indices = @transform_4, window_bounds = array<i64: 192, 32>}, {pipeline_mode = #tpu.pipeline_mode<synchronous>, transform_indices = @transform_5, window_bounds = array<i64: 10, 32>}, {pipeline_mode = #tpu.pipeline_mode<synchronous>, transform_indices = @transform_6, window_bounds = array<i64: 1, 128>}, {pipeline_mode = #tpu.pipeline_mode<synchronous>, transform_indices = @transform_7, window_bounds = array<i64: 2, 128>}]} {
    %c0 = arith.constant 0 : index
    %c0_0 = arith.constant 0 : index
    %0 = vector.load %arg1[%c0, %c0_0] : memref<16x32xf32, #tpu.memory_space<vmem>>, vector<16x32xf32>
    %1 = arith.truncf %0 : vector<16x32xf32> to vector<16x32xbf16>
    %c0_1 = arith.constant 0 : index
    %c0_2 = arith.constant 0 : index
    %2 = vector.load %arg6[%c0_1, %c0_2] : memref<10x32xf32, #tpu.memory_space<vmem>>, vector<10x32xf32>
    %c0_3 = arith.constant 0 : index
    %c0_4 = arith.constant 0 : index
    %3 = vector.load %arg5[%c0_3, %c0_4] : memref<192x32xbf16, #tpu.memory_space<vmem>>, vector<192x32xbf16>
    %4 = vector.extract_strided_slice %3 {offsets = [0, 0], sizes = [32, 32], strides = [1, 1]} : vector<192x32xbf16> to vector<32x32xbf16>
    %5 = vector.extract_strided_slice %3 {offsets = [32, 0], sizes = [32, 32], strides = [1, 1]} : vector<192x32xbf16> to vector<32x32xbf16>
    %6 = vector.extract_strided_slice %3 {offsets = [64, 0], sizes = [128, 32], strides = [1, 1]} : vector<192x32xbf16> to vector<128x32xbf16>
    %c0_5 = arith.constant 0 : index
    %c0_6 = arith.constant 0 : index
    %7 = vector.load %arg3[%c0_5, %c0_6] : memref<32x96xbf16, #tpu.memory_space<vmem>>, vector<32x96xbf16>
    %cst = arith.constant dense<0.000000e+00> : vector<16x96xf32>
    %8 = tpu.matmul %1, %7, %cst {dimension_numbers = #tpu.dot_dimension_numbers<[1], [0], [0], [1], [0, 0, 1, 1], [], []>} : vector<16x32xbf16>, vector<32x96xbf16>, vector<16x96xf32> -> vector<16x96xf32>
    %9 = vector.extract_strided_slice %8 {offsets = [0, 0], sizes = [16, 32], strides = [1, 1]} : vector<16x96xf32> to vector<16x32xf32>
    %10 = vector.extract_strided_slice %2 {offsets = [0, 0], sizes = [1, 32], strides = [1, 1]} : vector<10x32xf32> to vector<1x32xf32>
    %11 = vector.broadcast %10 : vector<1x32xf32> to vector<16x32xf32>
    %12 = arith.addf %9, %11 : vector<16x32xf32>
    %cst_7 = arith.constant 0.176776692 : f32
    %13 = vector.broadcast %cst_7 : f32 to vector<16x32xf32>
    %14 = arith.mulf %12, %13 : vector<16x32xf32>
    %15 = vector.extract_strided_slice %8 {offsets = [0, 32], sizes = [16, 32], strides = [1, 1]} : vector<16x96xf32> to vector<16x32xf32>
    %16 = vector.extract_strided_slice %2 {offsets = [1, 0], sizes = [1, 32], strides = [1, 1]} : vector<10x32xf32> to vector<1x32xf32>
    %17 = vector.broadcast %16 : vector<1x32xf32> to vector<16x32xf32>
    %18 = arith.addf %15, %17 : vector<16x32xf32>
    %19 = vector.extract_strided_slice %8 {offsets = [0, 64], sizes = [16, 32], strides = [1, 1]} : vector<16x96xf32> to vector<16x32xf32>
    %20 = vector.extract_strided_slice %2 {offsets = [2, 0], sizes = [1, 32], strides = [1, 1]} : vector<10x32xf32> to vector<1x32xf32>
    %21 = vector.broadcast %20 : vector<1x32xf32> to vector<16x32xf32>
    %22 = arith.addf %19, %21 : vector<16x32xf32>
    %23 = arith.truncf %14 : vector<16x32xf32> to vector<16x32xbf16>
    %24 = arith.truncf %18 : vector<16x32xf32> to vector<16x32xbf16>
    %25 = arith.truncf %22 : vector<16x32xf32> to vector<16x32xbf16>
    "tpu.trace_start"() <{level = 10 : i32, message = "md,nd->mn"}> : () -> ()
    %cst_8 = arith.constant dense<0.000000e+00> : vector<16x16xf32>
    %26 = tpu.matmul %23, %24, %cst_8 {dimension_numbers = #tpu.dot_dimension_numbers<[1], [1], [0], [0], [0, 0, 1, 0], [], []>} : vector<16x32xbf16>, vector<16x32xbf16>, vector<16x16xf32> -> vector<16x16xf32>
    "tpu.trace_stop"() : () -> ()
    %c0_9 = arith.constant 0 : index
    %c0_10 = arith.constant 0 : index
    %27 = vector.load %arg2[%c0_9, %c0_10] : memref<16x16xf32, #tpu.memory_space<vmem>>, vector<16x16xf32>
    %28 = arith.addf %26, %27 : vector<16x16xf32>
    %cst_11 = arith.constant dense<0xFF800000> : vector<16xf32>
    %29 = vector.multi_reduction <maximumf>, %28, %cst_11 [1] : vector<16x16xf32> to vector<16xf32>
    %30 = vector.shape_cast %29 : vector<16xf32> to vector<16x1xf32>
    %31 = vector.broadcast %30 : vector<16x1xf32> to vector<16x16xf32>
    %32 = arith.subf %28, %31 : vector<16x16xf32>
    %33 = math.exp %32 : vector<16x16xf32>
    %cst_12 = arith.constant dense<0.000000e+00> : vector<16xf32>
    %34 = vector.multi_reduction <add>, %33, %cst_12 [1] : vector<16x16xf32> to vector<16xf32>
    %35 = vector.shape_cast %34 : vector<16xf32> to vector<16x1xf32>
    %36 = tpu.reciprocal %35 {approx = true} : vector<16x1xf32> -> vector<16x1xf32>
    %37 = vector.broadcast %36 : vector<16x1xf32> to vector<16x16xf32>
    %38 = arith.mulf %33, %37 : vector<16x16xf32>
    %39 = arith.truncf %38 : vector<16x16xf32> to vector<16x16xbf16>
    %cst_13 = arith.constant dense<0.000000e+00> : vector<16x32xf32>
    %40 = tpu.matmul %39, %25, %cst_13 {dimension_numbers = #tpu.dot_dimension_numbers<[1], [0], [0], [1], [0, 0, 1, 1], [], []>} : vector<16x16xbf16>, vector<16x32xbf16>, vector<16x32xf32> -> vector<16x32xf32>
    %41 = arith.truncf %40 : vector<16x32xf32> to vector<16x32xbf16>
    %cst_14 = arith.constant dense<0.000000e+00> : vector<16x32xf32>
    %42 = tpu.matmul %41, %4, %cst_14 {dimension_numbers = #tpu.dot_dimension_numbers<[1], [0], [0], [1], [0, 0, 1, 1], [], []>} : vector<16x32xbf16>, vector<32x32xbf16>, vector<16x32xf32> -> vector<16x32xf32>
    %43 = vector.extract_strided_slice %2 {offsets = [3, 0], sizes = [1, 32], strides = [1, 1]} : vector<10x32xf32> to vector<1x32xf32>
    %44 = vector.broadcast %43 : vector<1x32xf32> to vector<16x32xf32>
    %45 = arith.addf %42, %44 : vector<16x32xf32>
    %46 = arith.addf %0, %45 : vector<16x32xf32>
    %47 = vector.extract_strided_slice %2 {offsets = [4, 0], sizes = [1, 32], strides = [1, 1]} : vector<10x32xf32> to vector<1x32xf32>
    %48 = vector.extract_strided_slice %2 {offsets = [5, 0], sizes = [1, 32], strides = [1, 1]} : vector<10x32xf32> to vector<1x32xf32>
    %cst_15 = arith.constant dense<0.000000e+00> : vector<16xf32>
    %49 = vector.multi_reduction <add>, %46, %cst_15 [1] : vector<16x32xf32> to vector<16xf32>
    %50 = vector.shape_cast %49 : vector<16xf32> to vector<16x1xf32>
    %cst_16 = arith.constant 3.200000e+01 : f32
    %51 = vector.broadcast %cst_16 : f32 to vector<16x1xf32>
    %52 = arith.divf %50, %51 : vector<16x1xf32>
    %53 = vector.broadcast %52 : vector<16x1xf32> to vector<16x32xf32>
    %54 = arith.subf %46, %53 : vector<16x32xf32>
    %55 = arith.mulf %54, %54 : vector<16x32xf32>
    %cst_17 = arith.constant dense<0.000000e+00> : vector<16xf32>
    %56 = vector.multi_reduction <add>, %55, %cst_17 [1] : vector<16x32xf32> to vector<16xf32>
    %57 = vector.shape_cast %56 : vector<16xf32> to vector<16x1xf32>
    %cst_18 = arith.constant 3.200000e+01 : f32
    %58 = vector.broadcast %cst_18 : f32 to vector<16x1xf32>
    %59 = arith.divf %57, %58 : vector<16x1xf32>
    %60 = vector.broadcast %52 : vector<16x1xf32> to vector<16x32xf32>
    %61 = arith.subf %46, %60 : vector<16x32xf32>
    %cst_19 = arith.constant 9.99999996E-13 : f32
    %62 = vector.broadcast %cst_19 : f32 to vector<16x1xf32>
    %63 = arith.addf %59, %62 : vector<16x1xf32>
    %64 = math.rsqrt %63 : vector<16x1xf32>
    %65 = vector.broadcast %64 : vector<16x1xf32> to vector<16x32xf32>
    %66 = arith.mulf %61, %65 : vector<16x32xf32>
    %67 = vector.broadcast %47 : vector<1x32xf32> to vector<16x32xf32>
    %68 = arith.mulf %66, %67 : vector<16x32xf32>
    %69 = vector.broadcast %48 : vector<1x32xf32> to vector<16x32xf32>
    %70 = arith.addf %68, %69 : vector<16x32xf32>
    %71 = arith.truncf %70 : vector<16x32xf32> to vector<16x32xbf16>
    %c0_20 = arith.constant 0 : index
    %c0_21 = arith.constant 0 : index
    %72 = vector.load %arg4[%c0_20, %c0_21] : memref<32x128xbf16, #tpu.memory_space<vmem>>, vector<32x128xbf16>
    %cst_22 = arith.constant dense<0.000000e+00> : vector<16x128xf32>
    %73 = tpu.matmul %71, %72, %cst_22 {dimension_numbers = #tpu.dot_dimension_numbers<[1], [0], [0], [1], [0, 0, 1, 1], [], []>} : vector<16x32xbf16>, vector<32x128xbf16>, vector<16x128xf32> -> vector<16x128xf32>
    %c0_23 = arith.constant 0 : index
    %c0_24 = arith.constant 0 : index
    %74 = vector.load %arg7[%c0_23, %c0_24] : memref<1x128xf32, #tpu.memory_space<vmem>>, vector<1x128xf32>
    %75 = vector.broadcast %74 : vector<1x128xf32> to vector<16x128xf32>
    %76 = arith.addf %73, %75 : vector<16x128xf32>
    %cst_25 = arith.constant 5.000000e-01 : f32
    %77 = vector.broadcast %cst_25 : f32 to vector<16x128xf32>
    %78 = arith.mulf %77, %76 : vector<16x128xf32>
    %cst_26 = arith.constant 4.471500e-02 : f32
    %79 = vector.broadcast %cst_26 : f32 to vector<16x128xf32>
    %80 = arith.mulf %79, %76 : vector<16x128xf32>
    %81 = arith.mulf %80, %76 : vector<16x128xf32>
    %82 = arith.mulf %81, %76 : vector<16x128xf32>
    %83 = arith.addf %76, %82 : vector<16x128xf32>
    %cst_27 = arith.constant 0.797884583 : f32
    %84 = vector.broadcast %cst_27 : f32 to vector<16x128xf32>
    %85 = arith.mulf %84, %83 : vector<16x128xf32>
    %86 = math.tanh %85 : vector<16x128xf32>
    %cst_28 = arith.constant 1.000000e+00 : f32
    %87 = vector.broadcast %cst_28 : f32 to vector<16x128xf32>
    %88 = arith.addf %87, %86 : vector<16x128xf32>
    %89 = arith.mulf %78, %88 : vector<16x128xf32>
    %90 = arith.truncf %89 : vector<16x128xf32> to vector<16x128xbf16>
    %cst_29 = arith.constant dense<0.000000e+00> : vector<16x32xf32>
    %91 = tpu.matmul %90, %6, %cst_29 {dimension_numbers = #tpu.dot_dimension_numbers<[1], [0], [0], [1], [0, 0, 1, 1], [], []>} : vector<16x128xbf16>, vector<128x32xbf16>, vector<16x32xf32> -> vector<16x32xf32>
    %92 = vector.extract_strided_slice %2 {offsets = [6, 0], sizes = [1, 32], strides = [1, 1]} : vector<10x32xf32> to vector<1x32xf32>
    %93 = vector.broadcast %92 : vector<1x32xf32> to vector<16x32xf32>
    %94 = arith.addf %91, %93 : vector<16x32xf32>
    %95 = arith.addf %70, %94 : vector<16x32xf32>
    %96 = vector.extract_strided_slice %2 {offsets = [7, 0], sizes = [1, 32], strides = [1, 1]} : vector<10x32xf32> to vector<1x32xf32>
    %97 = vector.extract_strided_slice %2 {offsets = [8, 0], sizes = [1, 32], strides = [1, 1]} : vector<10x32xf32> to vector<1x32xf32>
    %cst_30 = arith.constant dense<0.000000e+00> : vector<16xf32>
    %98 = vector.multi_reduction <add>, %95, %cst_30 [1] : vector<16x32xf32> to vector<16xf32>
    %99 = vector.shape_cast %98 : vector<16xf32> to vector<16x1xf32>
    %cst_31 = arith.constant 3.200000e+01 : f32
    %100 = vector.broadcast %cst_31 : f32 to vector<16x1xf32>
    %101 = arith.divf %99, %100 : vector<16x1xf32>
    %102 = vector.broadcast %101 : vector<16x1xf32> to vector<16x32xf32>
    %103 = arith.subf %95, %102 : vector<16x32xf32>
    %104 = arith.mulf %103, %103 : vector<16x32xf32>
    %cst_32 = arith.constant dense<0.000000e+00> : vector<16xf32>
    %105 = vector.multi_reduction <add>, %104, %cst_32 [1] : vector<16x32xf32> to vector<16xf32>
    %106 = vector.shape_cast %105 : vector<16xf32> to vector<16x1xf32>
    %cst_33 = arith.constant 3.200000e+01 : f32
    %107 = vector.broadcast %cst_33 : f32 to vector<16x1xf32>
    %108 = arith.divf %106, %107 : vector<16x1xf32>
    %109 = vector.broadcast %101 : vector<16x1xf32> to vector<16x32xf32>
    %110 = arith.subf %95, %109 : vector<16x32xf32>
    %cst_34 = arith.constant 9.99999996E-13 : f32
    %111 = vector.broadcast %cst_34 : f32 to vector<16x1xf32>
    %112 = arith.addf %108, %111 : vector<16x1xf32>
    %113 = math.rsqrt %112 : vector<16x1xf32>
    %114 = vector.broadcast %113 : vector<16x1xf32> to vector<16x32xf32>
    %115 = arith.mulf %110, %114 : vector<16x32xf32>
    %116 = vector.broadcast %96 : vector<1x32xf32> to vector<16x32xf32>
    %117 = arith.mulf %115, %116 : vector<16x32xf32>
    %118 = vector.broadcast %97 : vector<1x32xf32> to vector<16x32xf32>
    %119 = arith.addf %117, %118 : vector<16x32xf32>
    %120 = vector.shape_cast %119 : vector<16x32xf32> to vector<2x8x32xf32>
    %121 = vector.extract_strided_slice %120 {offsets = [0, 0, 0], sizes = [2, 1, 32], strides = [1, 1, 1]} : vector<2x8x32xf32> to vector<2x1x32xf32>
    %122 = vector.shape_cast %121 : vector<2x1x32xf32> to vector<2x32xf32>
    %123 = arith.truncf %122 : vector<2x32xf32> to vector<2x32xbf16>
    %cst_35 = arith.constant dense<0.000000e+00> : vector<2x32xf32>
    %124 = tpu.matmul %123, %5, %cst_35 {dimension_numbers = #tpu.dot_dimension_numbers<[1], [0], [0], [1], [0, 0, 1, 1], [], []>} : vector<2x32xbf16>, vector<32x32xbf16>, vector<2x32xf32> -> vector<2x32xf32>
    %125 = vector.extract_strided_slice %2 {offsets = [9, 0], sizes = [1, 32], strides = [1, 1]} : vector<10x32xf32> to vector<1x32xf32>
    %126 = vector.broadcast %125 : vector<1x32xf32> to vector<2x32xf32>
    %127 = arith.addf %124, %126 : vector<2x32xf32>
    %128 = math.tanh %127 : vector<2x32xf32>
    %cst_36 = arith.constant 0.000000e+00 : f32
    %129 = vector.broadcast %cst_36 : f32 to vector<2x96xf32>
    %130 = tpu.concatenate %128, %129 in 1 : vector<2x32xf32>, vector<2x96xf32> -> vector<2x128xf32>
    %c0_37 = arith.constant 0 : index
    %c0_38 = arith.constant 0 : index
    %131 = vector.load %arg8[%c0_37, %c0_38] : memref<2x128xf32, #tpu.memory_space<vmem>>, vector<2x128xf32>
    tpu.vector_store %arg8[%c0_37, %c0_38], %130 {strides = array<i32>} : memref<2x128xf32, #tpu.memory_space<vmem>>, vector<2x128xf32>,
    return
  }
  func.func @transform_0(%arg0: i32) -> (i32, i32) {
    %c0_i32 = arith.constant 0 : i32
    %c0_i32_0 = arith.constant 0 : i32
    %c0_i32_1 = arith.constant 0 : i32
    return %c0_i32, %c0_i32_0 : i32, i32
  }
  func.func @transform_1(%arg0: i32) -> (i32, i32) {
    %c0_i32 = arith.constant 0 : i32
    %c0_i32_0 = arith.constant 0 : i32
    %c0_i32_1 = arith.constant 0 : i32
    return %c0_i32, %c0_i32_0 : i32, i32
  }
  func.func @transform_2(%arg0: i32) -> (i32, i32) {
    %c0_i32 = arith.constant 0 : i32
    %c0_i32_0 = arith.constant 0 : i32
    %c0_i32_1 = arith.constant 0 : i32
    return %c0_i32, %c0_i32_0 : i32, i32
  }
  func.func @transform_3(%arg0: i32) -> (i32, i32) {
    %c0_i32 = arith.constant 0 : i32
    %c0_i32_0 = arith.constant 0 : i32
    %c0_i32_1 = arith.constant 0 : i32
    return %c0_i32, %c0_i32_0 : i32, i32
  }
  func.func @transform_4(%arg0: i32) -> (i32, i32) {
    %c0_i32 = arith.constant 0 : i32
    %c0_i32_0 = arith.constant 0 : i32
    %c0_i32_1 = arith.constant 0 : i32
    return %c0_i32, %c0_i32_0 : i32, i32
  }
  func.func @transform_5(%arg0: i32) -> (i32, i32) {
    %c0_i32 = arith.constant 0 : i32
    %c0_i32_0 = arith.constant 0 : i32
    %c0_i32_1 = arith.constant 0 : i32
    return %c0_i32, %c0_i32_0 : i32, i32
  }
  func.func @transform_6(%arg0: i32) -> (i32, i32) {
    %c0_i32 = arith.constant 0 : i32
    %c0_i32_0 = arith.constant 0 : i32
    %c0_i32_1 = arith.constant 0 : i32
    return %c0_i32, %c0_i32_0 : i32, i32
  }
  func.func @transform_7(%arg0: i32) -> (i32, i32) {
    %c0_i32 = arith.constant 0 : i32
    %c0_i32_0 = arith.constant 0 : i32
    %c0_i32_1 = arith.constant 0 : i32
    return %c0_i32, %c0_i32_0 : i32, i32
  }
}

</mosaic_0001>

<llo_original>
// kernel: eq.8
$region0: #{eq.8}
  %s0 = inlined_call_operand.vmem [shape: s32[2,8], index: 0, kind: input, shape index: {}]
  %s1 = inlined_call_operand.vmem [shape: s32[16], index: 1, kind: output, shape index: {}]
  $region1: #{eq.8} parent=0
    #allocation0 [shape = 'u8[4096]{0}', space=vmem, size = 0x1000, scoped, tag = 'scoped mem for output reshape']
    #allocation1 [shape = 'u8[4096]{0}', space=vmem, size = 0x1000, scoped, tag = 'scoped mem for input reshape']
    %s3 = sshll.u32 1, 2
    %s4 = ssub.s32 %s3, 1
    %v5 = vld [vmem:[%s0] sm:%s4]
    %6 = vst [vmem:[#allocation1] sm:%s4] %v5
    %v7 = vld [vmem:[#allocation1] sm:$0x1]
    %vm8 = vcmask 64512
    %9 = vst.msk [vmem:[#allocation0] sm:$0x1] %vm8, %v7
    %s10 = scalar_lea.vmem [#allocation1], 1
    %v11 = vld [vmem:[%s10] sm:$0x1]
    %12 = vrot.lane.b32.xlu0 %v11, 8
    %v13 = vpop.permute.xlu0 %12
    %vm14 = vcmask 130112
    %15 = vst.msk [vmem:[#allocation0] sm:$0x1] %vm14, %v13
    %s17 = sshll.u32 1, 1
    %s18 = ssub.s32 %s17, 1
    %v20 = vld [vmem:[#allocation0] sm:%s18]
    %s21 = sshll.u32 1, 1
    %s22 = ssub.s32 %s21, 1
    %23 = vst [vmem:[%s1] sm:%s22] %v20

// kernel: encoder_forward.1
$region0: #{encoder_forward.1}
  #allocation0 [shape = 'u32[]', space=smem, size = 0x4, offset = 0x4, fixed_abs, tag = 'smem constant byte address 0x4 - core index']
  #allocation1 [shape = 'u32[144,128]{1,0:T(1,128)}', space=vmem, size = 0x12000, scoped, tag = 'internal scratch']
  %s0 = inlined_call_operand.vmem [shape: f32[16,32], index: 0, kind: input, shape index: {}]
  %s1 = inlined_call_operand.vmem [shape: f32[16,16], index: 1, kind: input, shape index: {}]
  %s2 = inlined_call_operand.vmem [shape: bf16[32,96], index: 2, kind: input, shape index: {}]
  %s3 = inlined_call_operand.vmem [shape: bf16[32,128], index: 3, kind: input, shape index: {}]
  %s4 = inlined_call_operand.vmem [shape: bf16[192,32], index: 4, kind: input, shape index: {}]
  %s5 = inlined_call_operand.vmem [shape: f32[10,32], index: 5, kind: input, shape index: {}]
  %s6 = inlined_call_operand.vmem [shape: f32[1,128], index: 6, kind: input, shape index: {}]
  %s7 = inlined_call_operand.hbm [shape: f32[2,128], index: 7, kind: output, shape index: {}]
  %s8 = sld [smem:[#allocation0]]
  $region38: #{encoder_forward.1} parent=0
    _
  %s10 = ssub.s32 1, %s8
  %s11 = scalar_select 0, %s10, %s8
  $region1: #{encoder_forward.1} parent=0
    #allocation2 [shape = 'u8[1024]{0}', space=vmem, size = 0x400, scoped, tag = 'output window, operand 0, single buffered']
    #allocation3 [shape = 's32[1]{0}', space=sflag, size = 0x4, scoped, tag = 'scoped memory for encoder_forward.1']
    %12 = vsyncpa [#allocation3], 0
    // Predicated region
    $region2: #{encoder_forward.1} parent=1 // pred_check
      _
    $region3: #{encoder_forward.1} parent=1 // pred_check_branch
      %14 = sbr.rel (0) target = $region5
    $region4: #{encoder_forward.1} parent=1 // pred_region
      _
    $region5: #{encoder_forward.1} parent=1 // pred_fallthru
      _
    // Predicated region
    $region6: #{encoder_forward.1} parent=1 // pred_check
      _
    $region7: #{encoder_forward.1} parent=1 // pred_check_branch
      %16 = sbr.rel (0) target = $region9
    $region8: #{encoder_forward.1} parent=1 // pred_region
      _
    $region9: #{encoder_forward.1} parent=1 // pred_fallthru
      _
    // Predicated region
    $region10: #{encoder_forward.1} parent=1 // pred_check
      _
    $region11: #{encoder_forward.1} parent=1 // pred_check_branch
      %18 = sbr.rel (0) target = $region13
    $region12: #{encoder_forward.1} parent=1 // pred_region
      _
    $region13: #{encoder_forward.1} parent=1 // pred_fallthru
      _
    // Predicated region
    $region14: #{encoder_forward.1} parent=1 // pred_check
      _
    $region15: #{encoder_forward.1} parent=1 // pred_check_branch
      %20 = sbr.rel (0) target = $region17
    $region16: #{encoder_forward.1} parent=1 // pred_region
      _
    $region17: #{encoder_forward.1} parent=1 // pred_fallthru
      _
    // Predicated region
    $region18: #{encoder_forward.1} parent=1 // pred_check
      _
    $region19: #{encoder_forward.1} parent=1 // pred_check_branch
      %22 = sbr.rel (0) target = $region21
    $region20: #{encoder_forward.1} parent=1 // pred_region
      _
    $region21: #{encoder_forward.1} parent=1 // pred_fallthru
      _
    // Predicated region
    $region22: #{encoder_forward.1} parent=1 // pred_check
      _
    $region23: #{encoder_forward.1} parent=1 // pred_check_branch
      %24 = sbr.rel (0) target = $region25
    $region24: #{encoder_forward.1} parent=1 // pred_region
      _
    $region25: #{encoder_forward.1} parent=1 // pred_fallthru
      _
    // Predicated region
    $region26: #{encoder_forward.1} parent=1 // pred_check
      _
    $region27: #{encoder_forward.1} parent=1 // pred_check_branch
      %26 = sbr.rel (0) target = $region29
    $region28: #{encoder_forward.1} parent=1 // pred_region
      _
    $region29: #{encoder_forward.1} parent=1 // pred_fallthru
      _
    %v28 = vld [vmem:[%s0] sm:$0xff]
    %v29 = vld [vmem:[%s0 + $0x8] sm:$0xff]
    %v30 = vpack.c.bf16 %v29, %v28
    %v31 = vld [vmem:[%s5] sm:$0xff]
    %v32 = vld [vmem:[%s5 + $0x8] sm:$0x3]
    %v33 = vld [vmem:[%s4] sm:$0xf]
    %v34 = vld [vmem:[%s4 + $0x4] sm:$0xf]
    %v35 = vld [vmem:[%s4 + $0x8] sm:$0xf]
    %v36 = vld [vmem:[%s4 + $0xc] sm:$0xf]
    %v37 = vld [vmem:[%s4 + $0x10] sm:$0xf]
    %v38 = vld [vmem:[%s4 + $0x14] sm:$0xf]
    %v39 = vld [vmem:[%s4 + $0x18] sm:$0xf]
    %v40 = vld [vmem:[%s4 + $0x1c] sm:$0xf]
    %v41 = vld [vmem:[%s4 + $0x20] sm:$0xf]
    %v42 = vld [vmem:[%s4 + $0x24] sm:$0xf]
    %v43 = vld [vmem:[%s4 + $0x28] sm:$0xf]
    %v44 = vld [vmem:[%s4 + $0x2c] sm:$0xf]
    %v45 = vld [vmem:[%s4 + $0x30] sm:$0xf]
    %v46 = vld [vmem:[%s4 + $0x34] sm:$0xf]
    %v47 = vld [vmem:[%s4 + $0x38] sm:$0xf]
    %v48 = vld [vmem:[%s4 + $0x3c] sm:$0xf]
    %v49 = vld [vmem:[%s4 + $0x40] sm:$0xf]
    %v50 = vld [vmem:[%s4 + $0x44] sm:$0xf]
    %v51 = vld [vmem:[%s4 + $0x48] sm:$0xf]
    %v52 = vld [vmem:[%s4 + $0x4c] sm:$0xf]
    %v53 = vld [vmem:[%s4 + $0x50] sm:$0xf]
    %v54 = vld [vmem:[%s4 + $0x54] sm:$0xf]
    %v55 = vld [vmem:[%s4 + $0x58] sm:$0xf]
    %v56 = vld [vmem:[%s4 + $0x5c] sm:$0xf]
    %v57 = vld [vmem:[%s2] sm:$0xf]
    %v58 = vld [vmem:[%s2 + $0x4] sm:$0xf]
    %v59 = vld [vmem:[%s2 + $0x8] sm:$0xf]
    %v60 = vld [vmem:[%s2 + $0xc] sm:$0xf]
    %v65 = vunpack.c.l.b16 %v57
    %v66 = vunpack.c.l.b16 %v58
    %v67 = vunpack.c.l.b16 %v59
    %v68 = vunpack.c.l.b16 %v60
    %v69 = vpack.c.b16 %v66, %v65
    %v70 = vpack.c.b16 %v68, %v67
    %vm73 = vcmask 261120
    %v75 = vsel %vm73, %v30, 0
    %77 = vmatprep.subr.bf16.mxu0 0
    %78 = vmatpush1.bf16.msra.mxu0 0
    %79 = vmatprep.subr.bf16.mxu0 0
    %80 = vmatpush1.bf16.msra.mxu0 0
    %81 = vmatprep.subr.bf16.mxu0 0
    %82 = vmatpush1.bf16.msra.mxu0 0
    %83 = vmatprep.subr.bf16.mxu0 0
    %84 = vmatpush1.bf16.msra.mxu0 0
    %85 = vmatprep.subr.bf16.mxu0 0
    %86 = vmatpush1.bf16.msra.mxu0 0
    %87 = vmatprep.subr.bf16.mxu0 0
    %88 = vmatpush1.bf16.msra.mxu0 0
    %89 = vmatprep.subr.bf16.mxu0 0
    %90 = vmatpush1.bf16.msra.mxu0 %v70
    %91 = vmatprep.subr.bf16.mxu0 0
    %92 = vmatpush1.bf16.msra.mxu0 %v69
    %93 = vmatprep.subr.bf16.mxu0 0
    %94 = vmatpush2.bf16.msra.mxu0 0
    %95 = vmatprep.subr.bf16.mxu0 0
    %96 = vmatpush2.bf16.msra.mxu0 0
    %97 = vmatprep.subr.bf16.mxu0 0
    %98 = vmatpush2.bf16.msra.mxu0 0
    %99 = vmatprep.subr.bf16.mxu0 0
    %100 = vmatpush2.bf16.msra.mxu0 0
    %101 = vmatprep.subr.bf16.mxu0 0
    %102 = vmatpush2.bf16.msra.mxu0 0
    %103 = vmatprep.subr.bf16.mxu0 0
    %104 = vmatpush2.bf16.msra.mxu0 0
    %105 = vmatprep.subr.bf16.mxu0 0
    %106 = vmatpush2.bf16.msra.mxu0 0
    %107 = vmatprep.subr.bf16.mxu0 0
    %108 = vmatpush2.bf16.msra.mxu0 0
    %109 = vmatprep.mubr.bf16.mxu0 0
    %110 = vmatmul.mubr.bf16.gmra.mxu0 %v75
    %v111 = vpop.f32.mrf.mxu0
    %v112 = vadd.f32 0.0, %v111
    %v113 = vpop.f32.mrf.mxu0
    %v114 = vpop.f32.mrf.mxu0
    %v115 = vadd.f32 0.0, %v114
    %v116 = vpop.f32.mrf.mxu0
    %117 = vdwg.mxu0
    %v118 = vlaneseq
    %v119 = vshrl.u32 %v118, 7
    %v120 = vsub.s32 0, %v119
    %v121 = vrot.slane %v31, %v120
    %v122 = vadd.f32 %v112, %v121
    %v123 = vadd.f32 %v115, %v121
    %v124 = vmul.f32 %v122, 0.17677669
    %v125 = vmul.f32 %v123, 0.17677669
    %v126 = vlaneseq
    %v127 = vshrl.u32 %v126, 7
    %v128 = vsub.s32 1, %v127
    %v129 = vrot.slane %v31, %v128
    %131 = vrot.lane.b32.xlu0 %v129, 32
    %v132 = vpop.permute.xlu0 %131
    %v134 = vadd.f32 %v112, %v132
    %v135 = vadd.f32 %v115, %v132
    %v136 = vlaneseq
    %v137 = vshrl.u32 %v136, 7
    %v138 = vsub.s32 2, %v137
    %v139 = vrot.slane %v31, %v138
    %141 = vrot.lane.b32.xlu0 %v139, 64
    %v142 = vpop.permute.xlu0 %141
    %v144 = vadd.f32 %v112, %v142
    %v145 = vadd.f32 %v115, %v142
    %v146 = vpack.c.bf16 %v125, %v124
    %v147 = vpack.c.bf16 %v135, %v134
    %v148 = vpack.c.bf16 %v145, %v144
    %v149 = vld [vmem:[%s1] sm:$0xff]
    %v150 = vld [vmem:[%s1 + $0x8] sm:$0xff]
    %152 = vrot.lane.b32.xlu0 %v147, 96
    %v153 = vpop.permute.xlu0 %152
    %v155 = vsel %vm73, %v146, 0
    %v158 = vsel %vm73, %v153, 0
    %160 = vmatprep.subr.bf16.mxu0 0
    %161 = vmatpush1.bf16.xpose.msra.mxu0 0
    %162 = vmatprep.subr.bf16.mxu0 0
    %163 = vmatpush1.bf16.xpose.msra.mxu0 0
    %164 = vmatprep.subr.bf16.mxu0 0
    %165 = vmatpush1.bf16.xpose.msra.mxu0 0
    %166 = vmatprep.subr.bf16.mxu0 0
    %167 = vmatpush1.bf16.xpose.msra.mxu0 0
    %168 = vmatprep.subr.bf16.mxu0 0
    %169 = vmatpush1.bf16.xpose.msra.mxu0 0
    %170 = vmatprep.subr.bf16.mxu0 0
    %171 = vmatpush1.bf16.xpose.msra.mxu0 0
    %172 = vmatprep.subr.bf16.mxu0 0
    %173 = vmatpush1.bf16.xpose.msra.mxu0 0
    %174 = vmatprep.subr.bf16.mxu0 0
    %175 = vmatpush1.bf16.xpose.msra.mxu0 %v158
    %176 = vmatprep.subr.bf16.mxu0 0
    %177 = vmatpush2.bf16.xpose.msra.mxu0 0
    %178 = vmatprep.subr.bf16.mxu0 0
    %179 = vmatpush2.bf16.xpose.msra.mxu0 0
    %180 = vmatprep.subr.bf16.mxu0 0
    %181 = vmatpush2.bf16.xpose.msra.mxu0 0
    %182 = vmatprep.subr.bf16.mxu0 0
    %183 = vmatpush2.bf16.xpose.msra.mxu0 0
    %184 = vmatprep.subr.bf16.mxu0 0
    %185 = vmatpush2.bf16.xpose.msra.mxu0 0
    %186 = vmatprep.subr.bf16.mxu0 0
    %187 = vmatpush2.bf16.xpose.msra.mxu0 0
    %188 = vmatprep.subr.bf16.mxu0 0
    %189 = vmatpush2.bf16.xpose.msra.mxu0 0
    %190 = vmatprep.subr.bf16.mxu0 0
    %191 = vmatpush2.bf16.xpose.msra.mxu0 0
    %192 = vmatprep.mubr.bf16.mxu0 0
    %193 = vmatmul.mubr.bf16.gmra.mxu0 %v155
    %v194 = vpop.f32.mrf.mxu0
    %v195 = vadd.f32 %v149, %v194
    %v196 = vpop.f32.mrf.mxu0
    %v197 = vpop.f32.mrf.mxu0
    %v198 = vadd.f32 %v150, %v197
    %v199 = vpop.f32.mrf.mxu0
    %200 = vdwg.mxu0
    %vm201 = vcmask 130048
    %v202 = vsel %vm201, %v195, -inf
    %203 = vmax.xlane.f32.xlu0 %v202
    %v204 = vpop.xlane.xlu0 %203
    %v205 = vsel %vm201, %v198, -inf
    %206 = vmax.xlane.f32.xlu0 %v205
    %v207 = vpop.xlane.xlu0 %206
    %v208 = vsub.f32 %v195, %v204
    %v209 = vsub.f32 %v198, %v207
    %v210 = vmul.f32 %v208, 1.442695
    %v211 = vpow.pop %v210
    %v212 = vmul.f32 %v209, 1.442695
    %v213 = vpow.pop %v212
    %v214 = vsel %vm201, %v211, 0.0
    %215 = vadd.xlane.f32.xlu0 %v214
    %v216 = vpop.xlane.xlu0 %215
    %v217 = vsel %vm201, %v213, 0.0
    %218 = vadd.xlane.f32.xlu0 %v217
    %v219 = vpop.xlane.xlu0 %218
    %v220 = vrcp.pop %v216
    %v221 = vrcp.pop %v219
    %v222 = vmul.f32 %v211, %v220
    %v223 = vmul.f32 %v213, %v221
    %v224 = vpack.c.bf16 %v223, %v222
    %226 = vrot.lane.b32.xlu0 %v148, 64
    %v227 = vpop.permute.xlu0 %226
    %v230 = vsel %vm201, %v224, 0
    %232 = vmatprep.subr.bf16.mxu0 0
    %233 = vmatpush1.bf16.msra.mxu0 0
    %234 = vmatprep.subr.bf16.mxu0 0
    %235 = vmatpush1.bf16.msra.mxu0 0
    %236 = vmatprep.subr.bf16.mxu0 0
    %237 = vmatpush1.bf16.msra.mxu0 0
    %238 = vmatprep.subr.bf16.mxu0 0
    %239 = vmatpush1.bf16.msra.mxu0 0
    %240 = vmatprep.subr.bf16.mxu0 0
    %241 = vmatpush1.bf16.msra.mxu0 0
    %242 = vmatprep.subr.bf16.mxu0 0
    %243 = vmatpush1.bf16.msra.mxu0 0
    %244 = vmatprep.subr.bf16.mxu0 0
    %245 = vmatpush1.bf16.msra.mxu0 0
    %246 = vmatprep.subr.bf16.mxu0 0
    %247 = vmatpush1.bf16.msra.mxu0 %v227
    %248 = vmatprep.subr.bf16.mxu0 0
    %249 = vmatpush2.bf16.msra.mxu0 0
    %250 = vmatprep.subr.bf16.mxu0 0
    %251 = vmatpush2.bf16.msra.mxu0 0
    %252 = vmatprep.subr.bf16.mxu0 0
    %253 = vmatpush2.bf16.msra.mxu0 0
    %254 = vmatprep.subr.bf16.mxu0 0
    %255 = vmatpush2.bf16.msra.mxu0 0
    %256 = vmatprep.subr.bf16.mxu0 0
    %257 = vmatpush2.bf16.msra.mxu0 0
    %258 = vmatprep.subr.bf16.mxu0 0
    %259 = vmatpush2.bf16.msra.mxu0 0
    %260 = vmatprep.subr.bf16.mxu0 0
    %261 = vmatpush2.bf16.msra.mxu0 0
    %262 = vmatprep.subr.bf16.mxu0 0
    %263 = vmatpush2.bf16.msra.mxu0 0
    %264 = vmatprep.mubr.bf16.mxu0 0
    %265 = vmatmul.mubr.bf16.gmra.mxu0 %v230
    %v266 = vpop.f32.mrf.mxu0
    %v267 = vadd.f32 0.0, %v266
    %v268 = vpop.f32.mrf.mxu0
    %v269 = vpop.f32.mrf.mxu0
    %v270 = vadd.f32 0.0, %v269
    %v271 = vpop.f32.mrf.mxu0
    %272 = vdwg.mxu0
    %v273 = vpack.c.bf16 %v270, %v267
    %v274 = vlaneseq
    %v275 = vshrl.u32 %v274, 7
    %v276 = vsub.s32 3, %v275
    %v277 = vrot.slane %v31, %v276
    %v282 = vunpack.c.l.b16 %v33
    %v283 = vunpack.c.l.b16 %v34
    %v284 = vunpack.c.l.b16 %v35
    %v285 = vunpack.c.l.b16 %v36
    %v286 = vpack.c.b16 %v283, %v282
    %v287 = vpack.c.b16 %v285, %v284
    %v291 = vsel %vm73, %v273, 0
    %293 = vmatprep.subr.bf16.mxu0 0
    %294 = vmatpush1.bf16.msra.mxu0 0
    %295 = vmatprep.subr.bf16.mxu0 0
    %296 = vmatpush1.bf16.msra.mxu0 0
    %297 = vmatprep.subr.bf16.mxu0 0
    %298 = vmatpush1.bf16.msra.mxu0 0
    %299 = vmatprep.subr.bf16.mxu0 0
    %300 = vmatpush1.bf16.msra.mxu0 0
    %301 = vmatprep.subr.bf16.mxu0 0
    %302 = vmatpush1.bf16.msra.mxu0 0
    %303 = vmatprep.subr.bf16.mxu0 0
    %304 = vmatpush1.bf16.msra.mxu0 0
    %305 = vmatprep.subr.bf16.mxu0 0
    %306 = vmatpush1.bf16.msra.mxu0 %v287
    %307 = vmatprep.subr.bf16.mxu0 0
    %308 = vmatpush1.bf16.msra.mxu0 %v286
    %309 = vmatprep.subr.bf16.mxu0 0
    %310 = vmatpush2.bf16.msra.mxu0 0
    %311 = vmatprep.subr.bf16.mxu0 0
    %312 = vmatpush2.bf16.msra.mxu0 0
    %313 = vmatprep.subr.bf16.mxu0 0
    %314 = vmatpush2.bf16.msra.mxu0 0
    %315 = vmatprep.subr.bf16.mxu0 0
    %316 = vmatpush2.bf16.msra.mxu0 0
    %317 = vmatprep.subr.bf16.mxu0 0
    %318 = vmatpush2.bf16.msra.mxu0 0
    %319 = vmatprep.subr.bf16.mxu0 0
    %320 = vmatpush2.bf16.msra.mxu0 0
    %321 = vmatprep.subr.bf16.mxu0 0
    %322 = vmatpush2.bf16.msra.mxu0 0
    %323 = vmatprep.subr.bf16.mxu0 0
    %324 = vmatpush2.bf16.msra.mxu0 0
    %325 = vmatprep.mubr.bf16.mxu0 0
    %326 = vmatmul.mubr.bf16.gmra.mxu0 %v291
    %v327 = vpop.f32.mrf.mxu0
    %v328 = vadd.f32 %v277, %v327
    %v329 = vpop.f32.mrf.mxu0
    %v330 = vpop.f32.mrf.mxu0
    %v331 = vadd.f32 %v277, %v330
    %v332 = vpop.f32.mrf.mxu0
    %333 = vdwg.mxu0
    %v334 = vadd.f32 %v28, %v328
    %v335 = vadd.f32 %v29, %v331
    %v336 = vsel %vm73, %v334, 0.0
    %337 = vadd.xlane.f32.xlu0 %v336
    %v338 = vpop.xlane.xlu0 %337
    %v339 = vsel %vm73, %v335, 0.0
    %340 = vadd.xlane.f32.xlu0 %v339
    %v341 = vpop.xlane.xlu0 %340
    %v342 = vrcp.pop 32.0
    %v343 = vmul.f32 %v338, %v342
    %v344 = vmul.f32 %v341, %v342
    %v345 = vsub.f32 %v334, %v343
    %v346 = vsub.f32 %v335, %v344
    %v347 = vmul.f32 %v345, %v345
    %v348 = vmul.f32 %v346, %v346
    %v349 = vsel %vm73, %v347, 0.0
    %350 = vadd.xlane.f32.xlu0 %v349
    %v351 = vpop.xlane.xlu0 %350
    %v352 = vsel %vm73, %v348, 0.0
    %353 = vadd.xlane.f32.xlu0 %v352
    %v354 = vpop.xlane.xlu0 %353
    %v355 = vmul.f32 %v351, %v342
    %v356 = vmul.f32 %v354, %v342
    %v357 = vadd.f32 %v355, 1e-12
    %v358 = vadd.f32 %v356, 1e-12
    %v359 = vrsqrt.pop %v357
    %v360 = vrsqrt.pop %v358
    %v361 = vmul.f32 %v345, %v359
    %v362 = vmul.f32 %v346, %v360
    %v363 = vlaneseq
    %v364 = vshrl.u32 %v363, 7
    %v365 = vsub.s32 4, %v364
    %v366 = vrot.slane %v31, %v365
    %v367 = vmul.f32 %v361, %v366
    %v368 = vmul.f32 %v362, %v366
    %v369 = vlaneseq
    %v370 = vshrl.u32 %v369, 7
    %v371 = vsub.s32 5, %v370
    %v372 = vrot.slane %v31, %v371
    %v373 = vadd.f32 %v367, %v372
    %v374 = vadd.f32 %v368, %v372
    %v375 = vpack.c.bf16 %v374, %v373
    %v376 = vld [vmem:[%s3] sm:$0xf]
    %v377 = vld [vmem:[%s3 + $0x4] sm:$0xf]
    %v378 = vld [vmem:[%s3 + $0x8] sm:$0xf]
    %v379 = vld [vmem:[%s3 + $0xc] sm:$0xf]
    %v380 = vld [vmem:[%s6] sm:$0x1]
    %v382 = vlaneseq
    %v383 = vshrl.u32 %v382, 7
    %v384 = vsub.s32 0, %v383
    %v385 = vrot.slane %v380, %v384
    %v391 = vunpack.c.l.b16 %v376
    %v392 = vunpack.c.l.b16 %v377
    %v393 = vunpack.c.l.b16 %v378
    %v394 = vunpack.c.l.b16 %v379
    %v395 = vpack.c.b16 %v392, %v391
    %v396 = vpack.c.b16 %v394, %v393
    %v400 = vsel %vm73, %v375, 0
    %402 = vmatprep.subr.bf16.mxu0 0
    %403 = vmatpush1.bf16.msra.mxu0 0
    %404 = vmatprep.subr.bf16.mxu0 0
    %405 = vmatpush1.bf16.msra.mxu0 0
    %406 = vmatprep.subr.bf16.mxu0 0
    %407 = vmatpush1.bf16.msra.mxu0 0
    %408 = vmatprep.subr.bf16.mxu0 0
    %409 = vmatpush1.bf16.msra.mxu0 0
    %410 = vmatprep.subr.bf16.mxu0 0
    %411 = vmatpush1.bf16.msra.mxu0 0
    %412 = vmatprep.subr.bf16.mxu0 0
    %413 = vmatpush1.bf16.msra.mxu0 0
    %414 = vmatprep.subr.bf16.mxu0 0
    %415 = vmatpush1.bf16.msra.mxu0 %v396
    %416 = vmatprep.subr.bf16.mxu0 0
    %417 = vmatpush1.bf16.msra.mxu0 %v395
    %418 = vmatprep.subr.bf16.mxu0 0
    %419 = vmatpush2.bf16.msra.mxu0 0
    %420 = vmatprep.subr.bf16.mxu0 0
    %421 = vmatpush2.bf16.msra.mxu0 0
    %422 = vmatprep.subr.bf16.mxu0 0
    %423 = vmatpush2.bf16.msra.mxu0 0
    %424 = vmatprep.subr.bf16.mxu0 0
    %425 = vmatpush2.bf16.msra.mxu0 0
    %426 = vmatprep.subr.bf16.mxu0 0
    %427 = vmatpush2.bf16.msra.mxu0 0
    %428 = vmatprep.subr.bf16.mxu0 0
    %429 = vmatpush2.bf16.msra.mxu0 0
    %430 = vmatprep.subr.bf16.mxu0 0
    %431 = vmatpush2.bf16.msra.mxu0 0
    %432 = vmatprep.subr.bf16.mxu0 0
    %433 = vmatpush2.bf16.msra.mxu0 0
    %434 = vmatprep.mubr.bf16.mxu0 0
    %435 = vmatmul.mubr.bf16.gmra.mxu0 %v400
    %v436 = vpop.f32.mrf.mxu0
    %v437 = vadd.f32 %v385, %v436
    %v438 = vpop.f32.mrf.mxu0
    %v439 = vpop.f32.mrf.mxu0
    %v440 = vadd.f32 %v385, %v439
    %v441 = vpop.f32.mrf.mxu0
    %442 = vdwg.mxu0
    %v443 = vmul.f32 %v437, 0.5
    %v444 = vmul.f32 %v440, 0.5
    %v445 = vmul.f32 %v437, 0.044715
    %v446 = vmul.f32 %v440, 0.044715
    %v447 = vmul.f32 %v445, %v437
    %v448 = vmul.f32 %v446, %v440
    %v449 = vmul.f32 %v447, %v437
    %v450 = vmul.f32 %v448, %v440
    %v451 = vadd.f32 %v437, %v449
    %v452 = vadd.f32 %v440, %v450
    %v453 = vmul.f32 %v451, 0.7978846
    %v454 = vmul.f32 %v452, 0.7978846
    %v455 = vtanh.pop %v453
    %v456 = vtanh.pop %v454
    %v457 = vadd.f32 %v455, 1.0
    %v458 = vadd.f32 %v456, 1.0
    %v459 = vmul.f32 %v443, %v457
    %v460 = vmul.f32 %v444, %v458
    %v461 = vpack.c.bf16 %v460, %v459
    %v462 = vlaneseq
    %v463 = vshrl.u32 %v462, 7
    %v464 = vsub.s32 6, %v463
    %v465 = vrot.slane %v31, %v464
    %v482 = vunpack.c.l.b16 %v41
    %v483 = vunpack.c.l.b16 %v42
    %v484 = vunpack.c.l.b16 %v43
    %v485 = vunpack.c.l.b16 %v44
    %v486 = vunpack.c.l.b16 %v45
    %v487 = vunpack.c.l.b16 %v46
    %v488 = vunpack.c.l.b16 %v47
    %v489 = vunpack.c.l.b16 %v48
    %v490 = vunpack.c.l.b16 %v49
    %v491 = vunpack.c.l.b16 %v50
    %v492 = vunpack.c.l.b16 %v51
    %v493 = vunpack.c.l.b16 %v52
    %v494 = vunpack.c.l.b16 %v53
    %v495 = vunpack.c.l.b16 %v54
    %v496 = vunpack.c.l.b16 %v55
    %v497 = vunpack.c.l.b16 %v56
    %v498 = vpack.c.b16 %v483, %v482
    %v499 = vpack.c.b16 %v485, %v484
    %v500 = vpack.c.b16 %v487, %v486
    %v501 = vpack.c.b16 %v489, %v488
    %v502 = vpack.c.b16 %v491, %v490
    %v503 = vpack.c.b16 %v493, %v492
    %v504 = vpack.c.b16 %v495, %v494
    %v505 = vpack.c.b16 %v497, %v496
    %514 = vmatprep.subr.bf16.mxu0 0
    %515 = vmatpush1.bf16.msra.mxu0 %v505
    %516 = vmatprep.subr.bf16.mxu0 0
    %517 = vmatpush1.bf16.msra.mxu0 %v504
    %518 = vmatprep.subr.bf16.mxu0 0
    %519 = vmatpush1.bf16.msra.mxu0 %v503
    %520 = vmatprep.subr.bf16.mxu0 0
    %521 = vmatpush1.bf16.msra.mxu0 %v502
    %522 = vmatprep.subr.bf16.mxu0 0
    %523 = vmatpush1.bf16.msra.mxu0 %v501
    %524 = vmatprep.subr.bf16.mxu0 0
    %525 = vmatpush1.bf16.msra.mxu0 %v500
    %526 = vmatprep.subr.bf16.mxu0 0
    %527 = vmatpush1.bf16.msra.mxu0 %v499
    %528 = vmatprep.subr.bf16.mxu0 0
    %529 = vmatpush1.bf16.msra.mxu0 %v498
    %530 = vmatprep.subr.bf16.mxu0 0
    %531 = vmatpush2.bf16.msra.mxu0 0
    %532 = vmatprep.subr.bf16.mxu0 0
    %533 = vmatpush2.bf16.msra.mxu0 0
    %534 = vmatprep.subr.bf16.mxu0 0
    %535 = vmatpush2.bf16.msra.mxu0 0
    %536 = vmatprep.subr.bf16.mxu0 0
    %537 = vmatpush2.bf16.msra.mxu0 0
    %538 = vmatprep.subr.bf16.mxu0 0
    %539 = vmatpush2.bf16.msra.mxu0 0
    %540 = vmatprep.subr.bf16.mxu0 0
    %541 = vmatpush2.bf16.msra.mxu0 0
    %542 = vmatprep.subr.bf16.mxu0 0
    %543 = vmatpush2.bf16.msra.mxu0 0
    %544 = vmatprep.subr.bf16.mxu0 0
    %545 = vmatpush2.bf16.msra.mxu0 0
    %546 = vmatprep.mubr.bf16.mxu0 0
    %547 = vmatmul.mubr.bf16.gmra.mxu0 %v461
    %v548 = vpop.f32.mrf.mxu0
    %v549 = vadd.f32 %v465, %v548
    %v550 = vpop.f32.mrf.mxu0
    %v551 = vpop.f32.mrf.mxu0
    %v552 = vadd.f32 %v465, %v551
    %v553 = vpop.f32.mrf.mxu0
    %554 = vdwg.mxu0
    %v555 = vadd.f32 %v373, %v549
    %v556 = vadd.f32 %v374, %v552
    %v557 = vsel %vm73, %v555, 0.0
    %558 = vadd.xlane.f32.xlu0 %v557
    %v559 = vpop.xlane.xlu0 %558
    %v560 = vsel %vm73, %v556, 0.0
    %561 = vadd.xlane.f32.xlu0 %v560
    %v562 = vpop.xlane.xlu0 %561
    %v563 = vmul.f32 %v559, %v342
    %v564 = vmul.f32 %v562, %v342
    %v565 = vsub.f32 %v555, %v563
    %v566 = vsub.f32 %v556, %v564
    %v567 = vmul.f32 %v565, %v565
    %v568 = vmul.f32 %v566, %v566
    %v569 = vsel %vm73, %v567, 0.0
    %570 = vadd.xlane.f32.xlu0 %v569
    %v571 = vpop.xlane.xlu0 %570
    %v572 = vsel %vm73, %v568, 0.0
    %573 = vadd.xlane.f32.xlu0 %v572
    %v574 = vpop.xlane.xlu0 %573
    %v575 = vmul.f32 %v571, %v342
    %v576 = vmul.f32 %v574, %v342
    %v577 = vadd.f32 %v575, 1e-12
    %v578 = vadd.f32 %v576, 1e-12
    %v579 = vrsqrt.pop %v577
    %v580 = vrsqrt.pop %v578
    %v581 = vmul.f32 %v565, %v579
    %v582 = vmul.f32 %v566, %v580
    %v583 = vlaneseq
    %v584 = vshrl.u32 %v583, 7
    %v585 = vsub.s32 7, %v584
    %v586 = vrot.slane %v31, %v585
    %v587 = vmul.f32 %v581, %v586
    %v588 = vmul.f32 %v582, %v586
    %v589 = vlaneseq
    %v590 = vshrl.u32 %v589, 7
    %v591 = vsub.s32 0, %v590
    %v592 = vrot.slane %v32, %v591
    %v593 = vadd.f32 %v587, %v592
    %v594 = vadd.f32 %v588, %v592
    %v595 = vpack.c.bf16 %v593, %v593
    %v596 = vpack.c.bf16 %v594, %v594
    %v597 = vlaneseq
    %v598 = vshrl.u32 %v597, 7
    %v599 = vsub.s32 1, %v598
    %v600 = vrot.slane %v32, %v599
    %v603 = vunpack.c.l.b16 %v595
    %v604 = vunpack.c.l.b16 %v596
    %v605 = vrot.slane %v604, 7
    %vm606 = vcmask 1041409
    %v607 = vsel %vm606, %v605, %v603
    %v608 = vpack.c.b16 %v607, %v607
    %v613 = vunpack.c.l.b16 %v37
    %v614 = vunpack.c.l.b16 %v38
    %v615 = vunpack.c.l.b16 %v39
    %v616 = vunpack.c.l.b16 %v40
    %v617 = vpack.c.b16 %v614, %v613
    %v618 = vpack.c.b16 %v616, %v615
    %v622 = vsel %vm73, %v608, 0
    %624 = vmatprep.subr.bf16.mxu0 0
    %625 = vmatpush1.bf16.msra.mxu0 0
    %626 = vmatprep.subr.bf16.mxu0 0
    %627 = vmatpush1.bf16.msra.mxu0 0
    %628 = vmatprep.subr.bf16.mxu0 0
    %629 = vmatpush1.bf16.msra.mxu0 0
    %630 = vmatprep.subr.bf16.mxu0 0
    %631 = vmatpush1.bf16.msra.mxu0 0
    %632 = vmatprep.subr.bf16.mxu0 0
    %633 = vmatpush1.bf16.msra.mxu0 0
    %634 = vmatprep.subr.bf16.mxu0 0
    %635 = vmatpush1.bf16.msra.mxu0 0
    %636 = vmatprep.subr.bf16.mxu0 0
    %637 = vmatpush1.bf16.msra.mxu0 %v618
    %638 = vmatprep.subr.bf16.mxu0 0
    %639 = vmatpush1.bf16.msra.mxu0 %v617
    %640 = vmatprep.subr.bf16.mxu0 0
    %641 = vmatpush2.bf16.msra.mxu0 0
    %642 = vmatprep.subr.bf16.mxu0 0
    %643 = vmatpush2.bf16.msra.mxu0 0
    %644 = vmatprep.subr.bf16.mxu0 0
    %645 = vmatpush2.bf16.msra.mxu0 0
    %646 = vmatprep.subr.bf16.mxu0 0
    %647 = vmatpush2.bf16.msra.mxu0 0
    %648 = vmatprep.subr.bf16.mxu0 0
    %649 = vmatpush2.bf16.msra.mxu0 0
    %650 = vmatprep.subr.bf16.mxu0 0
    %651 = vmatpush2.bf16.msra.mxu0 0
    %652 = vmatprep.subr.bf16.mxu0 0
    %653 = vmatpush2.bf16.msra.mxu0 0
    %654 = vmatprep.subr.bf16.mxu0 0
    %655 = vmatpush2.bf16.msra.mxu0 0
    %656 = vmatprep.mubr.bf16.mxu0 0
    %657 = vmatmul.mubr.bf16.gmra.mxu0 %v622
    %v658 = vpop.f32.mrf.mxu0
    %v659 = vadd.f32 %v600, %v658
    %v660 = vpop.f32.mrf.mxu0
    %v661 = vpop.f32.mrf.mxu0
    %v662 = vpop.f32.mrf.mxu0
    %663 = vdwg.mxu0
    %v664 = vtanh.pop %v659
    %v665 = vsel %vm73, %v664, 0.0
    %666 = vst [vmem:[#allocation2] sm:$0x3] %v665
    // Predicated region
    $region30: #{encoder_forward.1} parent=1 // pred_check
      _
    $region31: #{encoder_forward.1} parent=1 // pred_check_branch
      %668 = sbr.rel (0) target = $region33
    $region32: #{encoder_forward.1} parent=1 // pred_region
      %s670 = ssub.s32 32, 32
      %671 = vsyncadd [#allocation3], %s670
      %s673 = sshll.u32 [#allocation2], 4
      %s674 = int_to_ptr.vmem [resolvable:$true] %s673
      %676 = dma.vmem_to_hbm [thread:$0]  %s674, 32, %s7, [#allocation3]
    $region33: #{encoder_forward.1} parent=1 // pred_fallthru
      _
    // Predicated region
    $region34: #{encoder_forward.1} parent=1 // pred_check
      _
    $region35: #{encoder_forward.1} parent=1 // pred_check_branch
      %678 = sbr.rel (0) target = $region37
    $region36: #{encoder_forward.1} parent=1 // pred_region
      %679 = dma.done [#allocation3], 32
    $region37: #{encoder_forward.1} parent=1 // pred_fallthru
      _
    %680 = vsyncpa [#allocation3], 1

</llo_original>
